<compile_context>
chip_gen: v7x
topology: tpu7x:2x2x1
jax: 0.10.0
libtpu: 0.0.40
codegen_flags: <defaults>
</compile_context>

<pallas_src>
import functools
import math

import jax
import jax.numpy as jnp
from jax import lax
from jax.experimental import pallas as pl
from jax.experimental.pallas import tpu as pltpu

INPUT_DIM = 16
HIDDEN_DIM = 32
LATENT_DIM = 2            # m = 2: vMF on the unit circle S^1
BATCH = 4

_H2 = HIDDEN_DIM * 2      # 64
_ROUNDS = 128             # rejection-sampling candidate rounds (= lane width)
_PAD_B = 8                # batch padded to one full sublane tile

# ---- packed bf16 weight slab: (208, 128); 16-aligned row offsets ------------
_R_W1 = 0                 # (16, 64)   encoder layer 1
_R_W2 = 16                # (64, 32)   encoder layer 2
_R_WH = 80                # (32, 3)    fused mean|concentration head
_R_WD2 = 112              # (32, 64)   decoder layer 2
_R_WD3 = 144              # (64, 128)  decoder layer 3 (real data in lanes 0:16)
_W_ROWS = 208
_W_COLS = 128

# ---- f32 bias slab: (8, 128); rows 6/7 hold the K=2 decoder weight rows -----
_BR_B1, _BR_B2, _BR_BH, _BR_BD1, _BR_BD2, _BR_BD3, _BR_WD1A, _BR_WD1B = range(8)
_B_ROWS = 8
_B_COLS = 128

# ---- lane layout of the single (8, 128) f32 output tile ---------------------
_L_XP = 0                 # lanes [0:16)  reconstruction
_L_Z = 32                 # lanes [32:34) z
_L_MEAN = 64              # lanes [64:66) mean
_L_KAPPA = 96             # lane 96       concentration
_L_LOSS = 97              # lane 97       loss (same value in every row)


# -----------------------------------------------------------------------------
# In-kernel helpers
# -----------------------------------------------------------------------------
def _i0e_i1e_poly(t):
    """A&S 9.8.2 / 9.8.4: sqrt(x)*exp(-x)*I{0,1}(x) as polynomials in t=3.75/x.

    Valid for x >= 3.75, which always holds here (concentration >= 10).
    """
    p0 = 0.00392377
    for c in (-0.01647633, 0.02635537, -0.02057706, 0.00916281,
              -0.00157565, 0.00225319, 0.01328592, 0.39894228):
        p0 = p0 * t + c
    p1 = -0.00420059
    for c in (0.01787654, -0.02895312, 0.02282967, -0.01031555,
              0.00163801, -0.00362018, -0.03988024, 0.39894228):
        p1 = p1 * t + c
    return p0, p1


# -----------------------------------------------------------------------------
# Fused forward kernel (runs once, no grid; all tiles are single vregs)
# -----------------------------------------------------------------------------
def spherical_vae_kernel(x_ref, w_ref, b_ref, u_ref, stat_ref, *, valid_batch):
    f32, bf16 = jnp.float32, jnp.bfloat16
    x = x_ref[...]                                               # (8, 16) f32

    # ---------------- encoder: initial_latent_projection (bf16 MXU) --------
    h1 = jnp.maximum(
        jnp.dot(x.astype(bf16), w_ref[_R_W1:_R_W1 + INPUT_DIM, 0:_H2],
                preferred_element_type=f32)
        + b_ref[_BR_B1:_BR_B1 + 1, 0:_H2], 0.0)
    h2 = jnp.maximum(
        jnp.dot(h1.astype(bf16), w_ref[_R_W2:_R_W2 + _H2, 0:HIDDEN_DIM],
                preferred_element_type=f32)
        + b_ref[_BR_B2:_BR_B2 + 1, 0:HIDDEN_DIM], 0.0)

    # fused mean + concentration heads: (8,32) @ (32,3)
    heads = (jnp.dot(h2.astype(bf16),
                     w_ref[_R_WH:_R_WH + HIDDEN_DIM, 0:LATENT_DIM + 1],
                     preferred_element_type=f32)
             + b_ref[_BR_BH:_BR_BH + 1, 0:LATENT_DIM + 1])
    mean_prime = heads[:, 0:LATENT_DIM]                          # (8, 2)
    sumsq = (mean_prime[:, 0:1] * mean_prime[:, 0:1]
             + mean_prime[:, 1:2] * mean_prime[:, 1:2])
    mean = mean_prime * lax.rsqrt(sumsq + 1e-12)                 # on S^1
    kappa = jnp.maximum(heads[:, LATENT_DIM:LATENT_DIM + 1], 0.0) + 10.0

    # ---------------- KL( vMF(mu, kappa) || Uniform(S^1) ) -------------------
    p0, p1 = _i0e_i1e_poly(3.75 / kappa)
    kl = kappa * (p1 / p0 - 1.0) - jnp.log(p0) + 0.5 * jnp.log(kappa)

    # ---------------- vMF rsample: Wood (1994) rejection, m = 2 --------------
    unif = u_ref[...]                                            # (8, 384) f32
    u_beta = unif[:, 0:_ROUNDS]                                  # (8, 128)
    u_acc = jnp.clip(unif[:, _ROUNDS:2 * _ROUNDS], 1e-7, 1.0 - 1e-7)
    sign = jnp.where(unif[:, 2 * _ROUNDS:2 * _ROUNDS + 1] < 0.5, -1.0, 1.0)

    c = jnp.sqrt(4.0 * kappa * kappa + 1.0)
    b_true = c - 2.0 * kappa
    b_app = 1.0 / (4.0 * kappa)
    s = jnp.clip(kappa - 10.0, 0.0, 1.0)         # reference's smooth switch
    bb = b_app * s + b_true * (1.0 - s)
    aa = (1.0 + 2.0 * kappa + c) * 0.25
    dd = (4.0 * aa * bb) / (1.0 + bb)            # (m-1)*log(m-1) == 0

    # Beta(1/2,1/2) candidates via e = sin^2(pi*u/2) (odd poly, |err| < 4e-6)
    th = (math.pi / 2.0) * u_beta
    th2 = th * th
    sin_th = th * (1.0 + th2 * (-1.0 / 6.0 + th2 * (1.0 / 120.0 + th2 *
                   (-1.0 / 5040.0 + th2 * (1.0 / 362880.0)))))
    e = sin_th * sin_th                                          # (8, 128)

    denom = 1.0 - (1.0 - bb) * e
    w_prop = (1.0 - (1.0 + bb) * e) / denom
    t = (2.0 * aa * bb) / denom
    # accept iff log(t) - t + d > log(u)  <=>  t*exp(d - t) > u   (one exp)
    accept = t * jnp.exp(dd - t) > u_acc                         # (8, 128)

    # first accepted round per row; fall back to last round if none accepted
    col = lax.broadcasted_iota(jnp.int32, (_PAD_B, _ROUNDS), 1).astype(f32)
    first = jnp.min(jnp.where(accept, col, float(_ROUNDS)),
                    axis=-1, keepdims=True)
    first = jnp.minimum(first, float(_ROUNDS - 1))               # (8, 1)
    w = jnp.sum(jnp.where(col == first, w_prop, 0.0),
                axis=-1, keepdims=True)                          # (8, 1)

    w_perp = jnp.sqrt(jnp.clip(1.0 - w * w, 1e-10, 1.0))
    lane2 = lax.broadcasted_iota(jnp.int32, (_PAD_B, LATENT_DIM), 1)
    x_tan = jnp.where(lane2 == 0, w, sign * w_perp)              # (8, 2)

    # Householder rotation mapping e1 -> mean (identity when mean ~= e1)
    u_h = jnp.where(lane2 == 0, 1.0, 0.0) - mean
    usq = u_h[:, 0:1] * u_h[:, 0:1] + u_h[:, 1:2] * u_h[:, 1:2]
    u_unit = u_h * lax.rsqrt(usq + 1e-12)
    proj = x_tan[:, 0:1] * u_unit[:, 0:1] + x_tan[:, 1:2] * u_unit[:, 1:2]
    z = x_tan - 2.0 * proj * u_unit                              # (8, 2)

    # ---------------- decoder ------------------------------------------------
    # K=2 layer as VPU broadcast FMAs (f32 weight rows live in the bias slab)
    d1 = jnp.maximum(
        z[:, 0:1] * b_ref[_BR_WD1A:_BR_WD1A + 1, 0:HIDDEN_DIM]
        + z[:, 1:2] * b_ref[_BR_WD1B:_BR_WD1B + 1, 0:HIDDEN_DIM]
        + b_ref[_BR_BD1:_BR_BD1 + 1, 0:HIDDEN_DIM], 0.0)
    d2 = jnp.maximum(
        jnp.dot(d1.astype(bf16), w_ref[_R_WD2:_R_WD2 + HIDDEN_DIM, 0:_H2],
                preferred_element_type=f32)
        + b_ref[_BR_BD2:_BR_BD2 + 1, 0:_H2], 0.0)
    # Last weight block is 128 lanes wide (zeros past lane 16), so this dot
    # produces the reconstruction directly in lanes [0:16) of the output tile.
    xp_wide = (jnp.dot(d2.astype(bf16), w_ref[_R_WD3:_R_WD3 + _H2, :],
                       preferred_element_type=f32)
               + b_ref[_BR_BD3:_BR_BD3 + 1, :])                  # (8, 128)
    x_prime = xp_wide[:, 0:INPUT_DIM]                            # (8, 16)

    # ---------------- loss = KL.mean() + L1(x', x) over real batch rows -----
    row = lax.broadcasted_iota(jnp.int32, (_PAD_B, 1), 0)
    valid = (row < valid_batch).astype(f32)                      # (8, 1)
    kl_mean = jnp.sum(kl * valid) * (1.0 / valid_batch)
    l1 = jnp.sum(jnp.abs(x_prime - x) * valid) * (1.0 / (valid_batch * INPUT_DIM))
    loss = kl_mean + l1

    # -------- assemble the (8,128) stats tile in registers, store ONCE ------
    lane = lax.broadcasted_iota(jnp.int32, (_PAD_B, 128), 1)
    tile = xp_wide                                  # x' in lanes 0:16, 0 else
    tile = jnp.where(lane == _L_Z, z[:, 0:1], tile)
    tile = jnp.where(lane == _L_Z + 1, z[:, 1:2], tile)
    tile = jnp.where(lane == _L_MEAN, mean[:, 0:1], tile)
    tile = jnp.where(lane == _L_MEAN + 1, mean[:, 1:2], tile)
    tile = jnp.where(lane == _L_KAPPA, kappa, tile)
    tile = jnp.where(lane == _L_LOSS, loss, tile)
    stat_ref[...] = tile


# -----------------------------------------------------------------------------
# Wrapper
# -----------------------------------------------------------------------------
_VMEM = pl.BlockSpec(memory_space=pltpu.MemorySpace.VMEM)


@jax.jit
def spherical_vae_forward(w_packed, b_packed, x, unif):
    B = x.shape[0]
    assert B <= _PAD_B, "single-tile layout assumes batch <= 8"
    x_pad = x if B == _PAD_B else jnp.pad(x, ((0, _PAD_B - B), (0, 0)))
    stats = pl.pallas_call(
        functools.partial(spherical_vae_kernel, valid_batch=B),
        out_shape=jax.ShapeDtypeStruct((_PAD_B, 128), jnp.float32),
        in_specs=[_VMEM, _VMEM, _VMEM, _VMEM],
        out_specs=_VMEM,
    )(x_pad, w_packed, b_packed, unif)
    return {
        "concentration": stats[0:B, _L_KAPPA:_L_KAPPA + 1],
        "loss": stats[0, _L_LOSS],
        "mean": stats[0:B, _L_MEAN:_L_MEAN + LATENT_DIM],
        "reconstruction": stats[0:B, _L_XP:_L_XP + INPUT_DIM],
        "z": stats[0:B, _L_Z:_L_Z + LATENT_DIM],
    }


# -----------------------------------------------------------------------------
# Parameter init (PyTorch-Linear-style uniform) and packing
# -----------------------------------------------------------------------------
def _linear_params(key, fan_in, fan_out):
    kw, kb = jax.random.split(key)
    bound = 1.0 / math.sqrt(fan_in)
    w = jax.random.uniform(kw, (fan_in, fan_out), jnp.float32, -bound, bound)
    b = jax.random.uniform(kb, (fan_out,), jnp.float32, -bound, bound)
    return w, b


def init_params(key):
    keys = jax.random.split(key, 7)
    p = {}
    p["w1"], p["b1"] = _linear_params(keys[0], INPUT_DIM, _H2)
    p["w2"], p["b2"] = _linear_params(keys[1], _H2, HIDDEN_DIM)
    p["wm"], p["bm"] = _linear_params(keys[2], HIDDEN_DIM, LATENT_DIM)
    p["wc"], p["bc"] = _linear_params(keys[3], HIDDEN_DIM, 1)
    p["wd1"], p["bd1"] = _linear_params(keys[4], LATENT_DIM, HIDDEN_DIM)
    p["wd2"], p["bd2"] = _linear_params(keys[5], HIDDEN_DIM, _H2)
    p["wd3"], p["bd3"] = _linear_params(keys[6], _H2, INPUT_DIM)
    return p


def pack_params(p):
    """Pack the MXU weights into one bf16 slab and biases (+Wd1) into one f32 slab."""
    w = jnp.zeros((_W_ROWS, _W_COLS), jnp.float32)
    w = w.at[_R_W1:_R_W1 + INPUT_DIM, 0:_H2].set(p["w1"])
    w = w.at[_R_W2:_R_W2 + _H2, 0:HIDDEN_DIM].set(p["w2"])
    w = w.at[_R_WH:_R_WH + HIDDEN_DIM, 0:LATENT_DIM + 1].set(
        jnp.concatenate([p["wm"], p["wc"]], axis=1))
    w = w.at[_R_WD2:_R_WD2 + HIDDEN_DIM, 0:_H2].set(p["wd2"])
    w = w.at[_R_WD3:_R_WD3 + _H2, 0:INPUT_DIM].set(p["wd3"])

    b = jnp.zeros((_B_ROWS, _B_COLS), jnp.float32)
    b = b.at[_BR_B1, 0:_H2].set(p["b1"])
    b = b.at[_BR_B2, 0:HIDDEN_DIM].set(p["b2"])
    b = b.at[_BR_BH, 0:LATENT_DIM + 1].set(jnp.concatenate([p["bm"], p["bc"]]))
    b = b.at[_BR_BD1, 0:HIDDEN_DIM].set(p["bd1"])
    b = b.at[_BR_BD2, 0:_H2].set(p["bd2"])
    b = b.at[_BR_BD3, 0:INPUT_DIM].set(p["bd3"])
    b = b.at[_BR_WD1A, 0:HIDDEN_DIM].set(p["wd1"][0])
    b = b.at[_BR_WD1B, 0:HIDDEN_DIM].set(p["wd1"][1])
    return w.astype(jnp.bfloat16), b


# -----------------------------------------------------------------------------
# Pure-JAX reference (mirrors the kernel's bf16-operand / f32-accumulate dots)
# -----------------------------------------------------------------------------
def _bf(a):
    return a.astype(jnp.bfloat16)


def _mm(a, w):
    return jnp.dot(_bf(a), _bf(w), preferred_element_type=jnp.float32)


def _encoder_ref(p, x):
    h1 = jnp.maximum(_mm(x, p["w1"]) + p["b1"], 0.0)
    h2 = jnp.maximum(_mm(h1, p["w2"]) + p["b2"], 0.0)
    mp = _mm(h2, p["wm"]) + p["bm"]
    mean = mp / jnp.linalg.norm(mp, axis=-1, keepdims=True)
    conc = jnp.maximum(_mm(h2, p["wc"]) + p["bc"], 0.0) + 10.0
    return mean, conc


def _decoder_ref(p, z):
    d1 = jnp.maximum(z[:, 0:1] * p["wd1"][0] + z[:, 1:2] * p["wd1"][1]
                     + p["bd1"], 0.0)
    d2 = jnp.maximum(_mm(d1, p["wd2"]) + p["bd2"], 0.0)
    return _mm(d2, p["wd3"]) + p["bd3"]


def _kl_ref(kappa):
    i0e = jax.scipy.special.i0e(kappa)
    i1e = jax.scipy.special.i1e(kappa)
    return kappa * (i1e / i0e - 1.0) - jnp.log(i0e)


if __name__ == "__main__":
    root = jax.random.PRNGKey(0)
    k_param, k_data, k_sample = jax.random.split(root, 3)

    params = init_params(k_param)
    w_packed, b_packed = pack_params(params)
    x = jax.random.normal(k_data, (BATCH, INPUT_DIM), dtype=jnp.float32)
    unif = jax.random.uniform(k_sample, (_PAD_B, 3 * _ROUNDS),
                              dtype=jnp.float32)

    out = jax.block_until_ready(
        spherical_vae_forward(w_packed, b_packed, x, unif))

    mean, conc, z = out["mean"], out["concentration"], out["z"]
    x_prime, loss = out["reconstruction"], out["loss"]

    # shape checks
    assert mean.shape == (BATCH, LATENT_DIM)
    assert conc.shape == (BATCH, 1)
    assert z.shape == (BATCH, LATENT_DIM)
    assert x_prime.shape == (BATCH, INPUT_DIM)

    # deterministic paths vs. pure-JAX reference of the PyTorch module
    mean_r, conc_r = _encoder_ref(params, x)
    assert bool(jnp.allclose(mean, mean_r, atol=1e-2, rtol=1e-2))
    assert bool(jnp.allclose(conc, conc_r, atol=1e-2, rtol=1e-2))
    assert bool(jnp.allclose(x_prime, _decoder_ref(params, z),
                             atol=1e-2, rtol=1e-2))
    loss_r = jnp.mean(_kl_ref(conc)) + jnp.mean(jnp.abs(x_prime - x))
    assert bool(jnp.abs(loss - loss_r) < 1e-2)

    # structural checks: mean and z on the unit circle, kappa >= 10, finite loss
    assert bool(jnp.all(jnp.abs(jnp.linalg.norm(mean, axis=-1) - 1.0) < 1e-3))
    assert bool(jnp.all(jnp.abs(jnp.linalg.norm(z, axis=-1) - 1.0) < 1e-3))
    assert bool(jnp.all(conc >= 10.0))
    assert bool(jnp.isfinite(loss))

    print("KERNEL_OK")
</pallas_src>

<mosaic_0001>
module attributes {stable_mosaic.version = 11 : i64} {
  func.func @spherical_vae_kernel(%arg0: memref<8x16xf32, #tpu.memory_space<vmem>>, %arg1: memref<208x128xbf16, #tpu.memory_space<vmem>>, %arg2: memref<8x128xf32, #tpu.memory_space<vmem>>, %arg3: memref<8x384xf32, #tpu.memory_space<vmem>>, %arg4: memref<8x128xf32, #tpu.memory_space<vmem>>) attributes {dimension_semantics = [], scalar_prefetch = 0 : i64, scratch_operands = 0 : i64, tpu.core_type = #tpu.core_type<tc>} {
    %c0 = arith.constant 0 : index
    %c0_0 = arith.constant 0 : index
    %0 = vector.load %arg0[%c0, %c0_0] : memref<8x16xf32, #tpu.memory_space<vmem>>, vector<8x16xf32>
    %1 = arith.truncf %0 : vector<8x16xf32> to vector<8x16xbf16>
    %c0_1 = arith.constant 0 : index
    %c0_2 = arith.constant 0 : index
    %2 = vector.load %arg1[%c0_1, %c0_2] : memref<208x128xbf16, #tpu.memory_space<vmem>>, vector<16x64xbf16>
    %cst = arith.constant dense<0.000000e+00> : vector<8x64xf32>
    %3 = tpu.matmul %1, %2, %cst {dimension_numbers = #tpu.dot_dimension_numbers<[1], [0], [0], [1], [0, 0, 1, 1], [], []>} : vector<8x16xbf16>, vector<16x64xbf16>, vector<8x64xf32> -> vector<8x64xf32>
    %c0_3 = arith.constant 0 : index
    %c0_4 = arith.constant 0 : index
    %4 = vector.load %arg2[%c0_3, %c0_4] : memref<8x128xf32, #tpu.memory_space<vmem>>, vector<1x64xf32>
    %5 = vector.broadcast %4 : vector<1x64xf32> to vector<8x64xf32>
    %6 = arith.addf %3, %5 : vector<8x64xf32>
    %cst_5 = arith.constant 0.000000e+00 : f32
    %7 = vector.broadcast %cst_5 : f32 to vector<8x64xf32>
    %8 = arith.maximumf %6, %7 : vector<8x64xf32>
    %9 = arith.truncf %8 : vector<8x64xf32> to vector<8x64xbf16>
    %c16 = arith.constant 16 : index
    %c0_6 = arith.constant 0 : index
    %10 = vector.load %arg1[%c16, %c0_6] : memref<208x128xbf16, #tpu.memory_space<vmem>>, vector<64x32xbf16>
    %cst_7 = arith.constant dense<0.000000e+00> : vector<8x32xf32>
    %11 = tpu.matmul %9, %10, %cst_7 {dimension_numbers = #tpu.dot_dimension_numbers<[1], [0], [0], [1], [0, 0, 1, 1], [], []>} : vector<8x64xbf16>, vector<64x32xbf16>, vector<8x32xf32> -> vector<8x32xf32>
    %c1 = arith.constant 1 : index
    %c0_8 = arith.constant 0 : index
    %12 = vector.load %arg2[%c1, %c0_8] : memref<8x128xf32, #tpu.memory_space<vmem>>, vector<1x32xf32>
    %13 = vector.broadcast %12 : vector<1x32xf32> to vector<8x32xf32>
    %14 = arith.addf %11, %13 : vector<8x32xf32>
    %cst_9 = arith.constant 0.000000e+00 : f32
    %15 = vector.broadcast %cst_9 : f32 to vector<8x32xf32>
    %16 = arith.maximumf %14, %15 : vector<8x32xf32>
    %17 = arith.truncf %16 : vector<8x32xf32> to vector<8x32xbf16>
    %c80 = arith.constant 80 : index
    %c0_10 = arith.constant 0 : index
    %18 = vector.load %arg1[%c80, %c0_10] : memref<208x128xbf16, #tpu.memory_space<vmem>>, vector<32x3xbf16>
    %cst_11 = arith.constant dense<0.000000e+00> : vector<8x3xf32>
    %19 = tpu.matmul %17, %18, %cst_11 {dimension_numbers = #tpu.dot_dimension_numbers<[1], [0], [0], [1], [0, 0, 1, 1], [], []>} : vector<8x32xbf16>, vector<32x3xbf16>, vector<8x3xf32> -> vector<8x3xf32>
    %c2 = arith.constant 2 : index
    %c0_12 = arith.constant 0 : index
    %20 = vector.load %arg2[%c2, %c0_12] : memref<8x128xf32, #tpu.memory_space<vmem>>, vector<1x3xf32>
    %21 = vector.broadcast %20 : vector<1x3xf32> to vector<8x3xf32>
    %22 = arith.addf %19, %21 : vector<8x3xf32>
    %23 = vector.extract_strided_slice %22 {offsets = [0, 0], sizes = [8, 2], strides = [1, 1]} : vector<8x3xf32> to vector<8x2xf32>
    %24 = vector.extract_strided_slice %23 {offsets = [0, 0], sizes = [8, 1], strides = [1, 1]} : vector<8x2xf32> to vector<8x1xf32>
    %25 = vector.extract_strided_slice %23 {offsets = [0, 0], sizes = [8, 1], strides = [1, 1]} : vector<8x2xf32> to vector<8x1xf32>
    %26 = arith.mulf %24, %25 : vector<8x1xf32>
    %27 = vector.extract_strided_slice %23 {offsets = [0, 1], sizes = [8, 1], strides = [1, 1]} : vector<8x2xf32> to vector<8x1xf32>
    %28 = vector.extract_strided_slice %23 {offsets = [0, 1], sizes = [8, 1], strides = [1, 1]} : vector<8x2xf32> to vector<8x1xf32>
    %29 = arith.mulf %27, %28 : vector<8x1xf32>
    %30 = arith.addf %26, %29 : vector<8x1xf32>
    %cst_13 = arith.constant 9.99999996E-13 : f32
    %31 = vector.broadcast %cst_13 : f32 to vector<8x1xf32>
    %32 = arith.addf %30, %31 : vector<8x1xf32>
    %33 = math.rsqrt %32 : vector<8x1xf32>
    %34 = vector.broadcast %33 : vector<8x1xf32> to vector<8x2xf32>
    %35 = arith.mulf %23, %34 : vector<8x2xf32>
    %36 = vector.extract_strided_slice %22 {offsets = [0, 2], sizes = [8, 1], strides = [1, 1]} : vector<8x3xf32> to vector<8x1xf32>
    %cst_14 = arith.constant 0.000000e+00 : f32
    %37 = vector.broadcast %cst_14 : f32 to vector<8x1xf32>
    %38 = arith.maximumf %36, %37 : vector<8x1xf32>
    %cst_15 = arith.constant 1.000000e+01 : f32
    %39 = vector.broadcast %cst_15 : f32 to vector<8x1xf32>
    %40 = arith.addf %38, %39 : vector<8x1xf32>
    %cst_16 = arith.constant 3.750000e+00 : f32
    %41 = vector.broadcast %cst_16 : f32 to vector<8x1xf32>
    %42 = arith.divf %41, %40 : vector<8x1xf32>
    %cst_17 = arith.constant 3.923770e-03 : f32
    %43 = vector.broadcast %cst_17 : f32 to vector<8x1xf32>
    %44 = arith.mulf %43, %42 : vector<8x1xf32>
    %cst_18 = arith.constant -0.0164763294 : f32
    %45 = vector.broadcast %cst_18 : f32 to vector<8x1xf32>
    %46 = arith.addf %44, %45 : vector<8x1xf32>
    %47 = arith.mulf %46, %42 : vector<8x1xf32>
    %cst_19 = arith.constant 0.0263553709 : f32
    %48 = vector.broadcast %cst_19 : f32 to vector<8x1xf32>
    %49 = arith.addf %47, %48 : vector<8x1xf32>
    %50 = arith.mulf %49, %42 : vector<8x1xf32>
    %cst_20 = arith.constant -0.0205770601 : f32
    %51 = vector.broadcast %cst_20 : f32 to vector<8x1xf32>
    %52 = arith.addf %50, %51 : vector<8x1xf32>
    %53 = arith.mulf %52, %42 : vector<8x1xf32>
    %cst_21 = arith.constant 0.00916280969 : f32
    %54 = vector.broadcast %cst_21 : f32 to vector<8x1xf32>
    %55 = arith.addf %53, %54 : vector<8x1xf32>
    %56 = arith.mulf %55, %42 : vector<8x1xf32>
    %cst_22 = arith.constant -1.575650e-03 : f32
    %57 = vector.broadcast %cst_22 : f32 to vector<8x1xf32>
    %58 = arith.addf %56, %57 : vector<8x1xf32>
    %59 = arith.mulf %58, %42 : vector<8x1xf32>
    %cst_23 = arith.constant 2.253190e-03 : f32
    %60 = vector.broadcast %cst_23 : f32 to vector<8x1xf32>
    %61 = arith.addf %59, %60 : vector<8x1xf32>
    %62 = arith.mulf %61, %42 : vector<8x1xf32>
    %cst_24 = arith.constant 0.01328592 : f32
    %63 = vector.broadcast %cst_24 : f32 to vector<8x1xf32>
    %64 = arith.addf %62, %63 : vector<8x1xf32>
    %65 = arith.mulf %64, %42 : vector<8x1xf32>
    %cst_25 = arith.constant 0.398942292 : f32
    %66 = vector.broadcast %cst_25 : f32 to vector<8x1xf32>
    %67 = arith.addf %65, %66 : vector<8x1xf32>
    %cst_26 = arith.constant -4.200590e-03 : f32
    %68 = vector.broadcast %cst_26 : f32 to vector<8x1xf32>
    %69 = arith.mulf %68, %42 : vector<8x1xf32>
    %cst_27 = arith.constant 0.0178765394 : f32
    %70 = vector.broadcast %cst_27 : f32 to vector<8x1xf32>
    %71 = arith.addf %69, %70 : vector<8x1xf32>
    %72 = arith.mulf %71, %42 : vector<8x1xf32>
    %cst_28 = arith.constant -0.0289531201 : f32
    %73 = vector.broadcast %cst_28 : f32 to vector<8x1xf32>
    %74 = arith.addf %72, %73 : vector<8x1xf32>
    %75 = arith.mulf %74, %42 : vector<8x1xf32>
    %cst_29 = arith.constant 0.0228296705 : f32
    %76 = vector.broadcast %cst_29 : f32 to vector<8x1xf32>
    %77 = arith.addf %75, %76 : vector<8x1xf32>
    %78 = arith.mulf %77, %42 : vector<8x1xf32>
    %cst_30 = arith.constant -0.0103155496 : f32
    %79 = vector.broadcast %cst_30 : f32 to vector<8x1xf32>
    %80 = arith.addf %78, %79 : vector<8x1xf32>
    %81 = arith.mulf %80, %42 : vector<8x1xf32>
    %cst_31 = arith.constant 1.638010e-03 : f32
    %82 = vector.broadcast %cst_31 : f32 to vector<8x1xf32>
    %83 = arith.addf %81, %82 : vector<8x1xf32>
    %84 = arith.mulf %83, %42 : vector<8x1xf32>
    %cst_32 = arith.constant -3.620180e-03 : f32
    %85 = vector.broadcast %cst_32 : f32 to vector<8x1xf32>
    %86 = arith.addf %84, %85 : vector<8x1xf32>
    %87 = arith.mulf %86, %42 : vector<8x1xf32>
    %cst_33 = arith.constant -0.0398802385 : f32
    %88 = vector.broadcast %cst_33 : f32 to vector<8x1xf32>
    %89 = arith.addf %87, %88 : vector<8x1xf32>
    %90 = arith.mulf %89, %42 : vector<8x1xf32>
    %cst_34 = arith.constant 0.398942292 : f32
    %91 = vector.broadcast %cst_34 : f32 to vector<8x1xf32>
    %92 = arith.addf %90, %91 : vector<8x1xf32>
    %93 = arith.divf %92, %67 : vector<8x1xf32>
    %cst_35 = arith.constant 1.000000e+00 : f32
    %94 = vector.broadcast %cst_35 : f32 to vector<8x1xf32>
    %95 = arith.subf %93, %94 : vector<8x1xf32>
    %96 = arith.mulf %40, %95 : vector<8x1xf32>
    %97 = math.log %67 : vector<8x1xf32>
    %98 = arith.subf %96, %97 : vector<8x1xf32>
    %99 = math.log %40 : vector<8x1xf32>
    %cst_36 = arith.constant 5.000000e-01 : f32
    %100 = vector.broadcast %cst_36 : f32 to vector<8x1xf32>
    %101 = arith.mulf %100, %99 : vector<8x1xf32>
    %102 = arith.addf %98, %101 : vector<8x1xf32>
    %c0_37 = arith.constant 0 : index
    %c0_38 = arith.constant 0 : index
    %103 = vector.load %arg3[%c0_37, %c0_38] : memref<8x384xf32, #tpu.memory_space<vmem>>, vector<8x384xf32>
    %104 = vector.extract_strided_slice %103 {offsets = [0, 0], sizes = [8, 128], strides = [1, 1]} : vector<8x384xf32> to vector<8x128xf32>
    %105 = vector.extract_strided_slice %103 {offsets = [0, 128], sizes = [8, 128], strides = [1, 1]} : vector<8x384xf32> to vector<8x128xf32>
    %cst_39 = arith.constant 1.000000e-07 : f32
    %cst_40 = arith.constant 0.99999988 : f32
    %106 = vector.broadcast %cst_39 : f32 to vector<8x128xf32>
    %107 = arith.maximumf %106, %105 : vector<8x128xf32>
    %108 = vector.broadcast %cst_40 : f32 to vector<8x128xf32>
    %109 = arith.minimumf %108, %107 : vector<8x128xf32>
    %110 = vector.extract_strided_slice %103 {offsets = [0, 256], sizes = [8, 1], strides = [1, 1]} : vector<8x384xf32> to vector<8x1xf32>
    %cst_41 = arith.constant 5.000000e-01 : f32
    %111 = vector.broadcast %cst_41 : f32 to vector<8x1xf32>
    %112 = arith.cmpf olt, %110, %111 : vector<8x1xf32>
    %cst_42 = arith.constant -1.000000e+00 : f32
    %cst_43 = arith.constant 1.000000e+00 : f32
    %113 = vector.broadcast %cst_42 : f32 to vector<8x1xf32>
    %114 = vector.broadcast %cst_43 : f32 to vector<8x1xf32>
    %115 = arith.select %112, %113, %114 : vector<8x1xi1>, vector<8x1xf32>
    %cst_44 = arith.constant 4.000000e+00 : f32
    %116 = vector.broadcast %cst_44 : f32 to vector<8x1xf32>
    %117 = arith.mulf %116, %40 : vector<8x1xf32>
    %118 = arith.mulf %117, %40 : vector<8x1xf32>
    %cst_45 = arith.constant 1.000000e+00 : f32
    %119 = vector.broadcast %cst_45 : f32 to vector<8x1xf32>
    %120 = arith.addf %118, %119 : vector<8x1xf32>
    %121 = math.sqrt %120 : vector<8x1xf32>
    %cst_46 = arith.constant 2.000000e+00 : f32
    %122 = vector.broadcast %cst_46 : f32 to vector<8x1xf32>
    %123 = arith.mulf %122, %40 : vector<8x1xf32>
    %124 = arith.subf %121, %123 : vector<8x1xf32>
    %cst_47 = arith.constant 4.000000e+00 : f32
    %125 = vector.broadcast %cst_47 : f32 to vector<8x1xf32>
    %126 = arith.mulf %125, %40 : vector<8x1xf32>
    %cst_48 = arith.constant 1.000000e+00 : f32
    %127 = vector.broadcast %cst_48 : f32 to vector<8x1xf32>
    %128 = arith.divf %127, %126 : vector<8x1xf32>
    %cst_49 = arith.constant 1.000000e+01 : f32
    %129 = vector.broadcast %cst_49 : f32 to vector<8x1xf32>
    %130 = arith.subf %40, %129 : vector<8x1xf32>
    %cst_50 = arith.constant 0.000000e+00 : f32
    %cst_51 = arith.constant 1.000000e+00 : f32
    %131 = vector.broadcast %cst_50 : f32 to vector<8x1xf32>
    %132 = arith.maximumf %131, %130 : vector<8x1xf32>
    %133 = vector.broadcast %cst_51 : f32 to vector<8x1xf32>
    %134 = arith.minimumf %133, %132 : vector<8x1xf32>
    %135 = arith.mulf %128, %134 : vector<8x1xf32>
    %cst_52 = arith.constant 1.000000e+00 : f32
    %136 = vector.broadcast %cst_52 : f32 to vector<8x1xf32>
    %137 = arith.subf %136, %134 : vector<8x1xf32>
    %138 = arith.mulf %124, %137 : vector<8x1xf32>
    %139 = arith.addf %135, %138 : vector<8x1xf32>
    %cst_53 = arith.constant 2.000000e+00 : f32
    %140 = vector.broadcast %cst_53 : f32 to vector<8x1xf32>
    %141 = arith.mulf %140, %40 : vector<8x1xf32>
    %cst_54 = arith.constant 1.000000e+00 : f32
    %142 = vector.broadcast %cst_54 : f32 to vector<8x1xf32>
    %143 = arith.addf %142, %141 : vector<8x1xf32>
    %144 = arith.addf %143, %121 : vector<8x1xf32>
    %cst_55 = arith.constant 2.500000e-01 : f32
    %145 = vector.broadcast %cst_55 : f32 to vector<8x1xf32>
    %146 = arith.mulf %144, %145 : vector<8x1xf32>
    %cst_56 = arith.constant 4.000000e+00 : f32
    %147 = vector.broadcast %cst_56 : f32 to vector<8x1xf32>
    %148 = arith.mulf %147, %146 : vector<8x1xf32>
    %149 = arith.mulf %148, %139 : vector<8x1xf32>
    %cst_57 = arith.constant 1.000000e+00 : f32
    %150 = vector.broadcast %cst_57 : f32 to vector<8x1xf32>
    %151 = arith.addf %150, %139 : vector<8x1xf32>
    %152 = arith.divf %149, %151 : vector<8x1xf32>
    %cst_58 = arith.constant 1.57079637 : f32
    %153 = vector.broadcast %cst_58 : f32 to vector<8x128xf32>
    %154 = arith.mulf %153, %104 : vector<8x128xf32>
    %155 = arith.mulf %154, %154 : vector<8x128xf32>
    %cst_59 = arith.constant 2.75573188E-6 : f32
    %156 = vector.broadcast %cst_59 : f32 to vector<8x128xf32>
    %157 = arith.mulf %155, %156 : vector<8x128xf32>
    %cst_60 = arith.constant -1.98412701E-4 : f32
    %158 = vector.broadcast %cst_60 : f32 to vector<8x128xf32>
    %159 = arith.addf %158, %157 : vector<8x128xf32>
    %160 = arith.mulf %155, %159 : vector<8x128xf32>
    %cst_61 = arith.constant 0.00833333377 : f32
    %161 = vector.broadcast %cst_61 : f32 to vector<8x128xf32>
    %162 = arith.addf %161, %160 : vector<8x128xf32>
    %163 = arith.mulf %155, %162 : vector<8x128xf32>
    %cst_62 = arith.constant -0.166666672 : f32
    %164 = vector.broadcast %cst_62 : f32 to vector<8x128xf32>
    %165 = arith.addf %164, %163 : vector<8x128xf32>
    %166 = arith.mulf %155, %165 : vector<8x128xf32>
    %cst_63 = arith.constant 1.000000e+00 : f32
    %167 = vector.broadcast %cst_63 : f32 to vector<8x128xf32>
    %168 = arith.addf %167, %166 : vector<8x128xf32>
    %169 = arith.mulf %154, %168 : vector<8x128xf32>
    %170 = arith.mulf %169, %169 : vector<8x128xf32>
    %cst_64 = arith.constant 1.000000e+00 : f32
    %171 = vector.broadcast %cst_64 : f32 to vector<8x1xf32>
    %172 = arith.subf %171, %139 : vector<8x1xf32>
    %173 = vector.broadcast %172 : vector<8x1xf32> to vector<8x128xf32>
    %174 = arith.mulf %173, %170 : vector<8x128xf32>
    %cst_65 = arith.constant 1.000000e+00 : f32
    %175 = vector.broadcast %cst_65 : f32 to vector<8x128xf32>
    %176 = arith.subf %175, %174 : vector<8x128xf32>
    %cst_66 = arith.constant 1.000000e+00 : f32
    %177 = vector.broadcast %cst_66 : f32 to vector<8x1xf32>
    %178 = arith.addf %177, %139 : vector<8x1xf32>
    %179 = vector.broadcast %178 : vector<8x1xf32> to vector<8x128xf32>
    %180 = arith.mulf %179, %170 : vector<8x128xf32>
    %cst_67 = arith.constant 1.000000e+00 : f32
    %181 = vector.broadcast %cst_67 : f32 to vector<8x128xf32>
    %182 = arith.subf %181, %180 : vector<8x128xf32>
    %183 = arith.divf %182, %176 : vector<8x128xf32>
    %cst_68 = arith.constant 2.000000e+00 : f32
    %184 = vector.broadcast %cst_68 : f32 to vector<8x1xf32>
    %185 = arith.mulf %184, %146 : vector<8x1xf32>
    %186 = arith.mulf %185, %139 : vector<8x1xf32>
    %187 = vector.broadcast %186 : vector<8x1xf32> to vector<8x128xf32>
    %188 = arith.divf %187, %176 : vector<8x128xf32>
    %189 = vector.broadcast %152 : vector<8x1xf32> to vector<8x128xf32>
    %190 = arith.subf %189, %188 : vector<8x128xf32>
    %191 = math.exp %190 : vector<8x128xf32>
    %192 = arith.mulf %188, %191 : vector<8x128xf32>
    %193 = arith.cmpf ogt, %192, %109 : vector<8x128xf32>
    %194 = tpu.iota {dimensions = array<i32: 1>} : vector<8x128xi32>
    %195 = arith.sitofp %194 : vector<8x128xi32> to vector<8x128xf32>
    %cst_69 = arith.constant 1.280000e+02 : f32
    %196 = vector.broadcast %cst_69 : f32 to vector<8x128xf32>
    %197 = arith.select %193, %195, %196 : vector<8x128xi1>, vector<8x128xf32>
    %cst_70 = arith.constant dense<0x7F800000> : vector<8xf32>
    %198 = vector.multi_reduction <minimumf>, %197, %cst_70 [1] : vector<8x128xf32> to vector<8xf32>
    %199 = vector.shape_cast %198 : vector<8xf32> to vector<8x1xf32>
    %cst_71 = arith.constant 1.270000e+02 : f32
    %200 = vector.broadcast %cst_71 : f32 to vector<8x1xf32>
    %201 = arith.minimumf %199, %200 : vector<8x1xf32>
    %202 = vector.broadcast %201 : vector<8x1xf32> to vector<8x128xf32>
    %203 = arith.cmpf oeq, %195, %202 : vector<8x128xf32>
    %cst_72 = arith.constant 0.000000e+00 : f32
    %204 = vector.broadcast %cst_72 : f32 to vector<8x128xf32>
    %205 = arith.select %203, %183, %204 : vector<8x128xi1>, vector<8x128xf32>
    %cst_73 = arith.constant dense<0.000000e+00> : vector<8xf32>
    %206 = vector.multi_reduction <add>, %205, %cst_73 [1] : vector<8x128xf32> to vector<8xf32>
    %207 = vector.shape_cast %206 : vector<8xf32> to vector<8x1xf32>
    %208 = arith.mulf %207, %207 : vector<8x1xf32>
    %cst_74 = arith.constant 1.000000e+00 : f32
    %209 = vector.broadcast %cst_74 : f32 to vector<8x1xf32>
    %210 = arith.subf %209, %208 : vector<8x1xf32>
    %cst_75 = arith.constant 1.000000e-10 : f32
    %cst_76 = arith.constant 1.000000e+00 : f32
    %211 = vector.broadcast %cst_75 : f32 to vector<8x1xf32>
    %212 = arith.maximumf %211, %210 : vector<8x1xf32>
    %213 = vector.broadcast %cst_76 : f32 to vector<8x1xf32>
    %214 = arith.minimumf %213, %212 : vector<8x1xf32>
    %215 = math.sqrt %214 : vector<8x1xf32>
    %216 = tpu.iota {dimensions = array<i32: 1>} : vector<8x2xi32>
    %c0_i32 = arith.constant 0 : i32
    %217 = vector.broadcast %c0_i32 : i32 to vector<8x2xi32>
    %218 = arith.cmpi eq, %216, %217 : vector<8x2xi32>
    %219 = arith.mulf %115, %215 : vector<8x1xf32>
    %220 = vector.shape_cast %207 : vector<8x1xf32> to vector<8x1xf32>
    %221 = vector.broadcast %220 : vector<8x1xf32> to vector<8x2xf32>
    %222 = vector.shape_cast %219 : vector<8x1xf32> to vector<8x1xf32>
    %223 = vector.broadcast %222 : vector<8x1xf32> to vector<8x2xf32>
    %224 = arith.select %218, %221, %223 : vector<8x2xi1>, vector<8x2xf32>
    %c0_i32_77 = arith.constant 0 : i32
    %225 = vector.broadcast %c0_i32_77 : i32 to vector<8x2xi32>
    %226 = arith.cmpi eq, %216, %225 : vector<8x2xi32>
    %cst_78 = arith.constant 1.000000e+00 : f32
    %cst_79 = arith.constant 0.000000e+00 : f32
    %227 = vector.broadcast %cst_78 : f32 to vector<8x2xf32>
    %228 = vector.broadcast %cst_79 : f32 to vector<8x2xf32>
    %229 = arith.select %226, %227, %228 : vector<8x2xi1>, vector<8x2xf32>
    %230 = arith.subf %229, %35 : vector<8x2xf32>
    %231 = vector.extract_strided_slice %230 {offsets = [0, 0], sizes = [8, 1], strides = [1, 1]} : vector<8x2xf32> to vector<8x1xf32>
    %232 = vector.extract_strided_slice %230 {offsets = [0, 0], sizes = [8, 1], strides = [1, 1]} : vector<8x2xf32> to vector<8x1xf32>
    %233 = arith.mulf %231, %232 : vector<8x1xf32>
    %234 = vector.extract_strided_slice %230 {offsets = [0, 1], sizes = [8, 1], strides = [1, 1]} : vector<8x2xf32> to vector<8x1xf32>
    %235 = vector.extract_strided_slice %230 {offsets = [0, 1], sizes = [8, 1], strides = [1, 1]} : vector<8x2xf32> to vector<8x1xf32>
    %236 = arith.mulf %234, %235 : vector<8x1xf32>
    %237 = arith.addf %233, %236 : vector<8x1xf32>
    %cst_80 = arith.constant 9.99999996E-13 : f32
    %238 = vector.broadcast %cst_80 : f32 to vector<8x1xf32>
    %239 = arith.addf %237, %238 : vector<8x1xf32>
    %240 = math.rsqrt %239 : vector<8x1xf32>
    %241 = vector.broadcast %240 : vector<8x1xf32> to vector<8x2xf32>
    %242 = arith.mulf %230, %241 : vector<8x2xf32>
    %243 = vector.extract_strided_slice %224 {offsets = [0, 0], sizes = [8, 1], strides = [1, 1]} : vector<8x2xf32> to vector<8x1xf32>
    %244 = vector.extract_strided_slice %242 {offsets = [0, 0], sizes = [8, 1], strides = [1, 1]} : vector<8x2xf32> to vector<8x1xf32>
    %245 = arith.mulf %243, %244 : vector<8x1xf32>
    %246 = vector.extract_strided_slice %224 {offsets = [0, 1], sizes = [8, 1], strides = [1, 1]} : vector<8x2xf32> to vector<8x1xf32>
    %247 = vector.extract_strided_slice %242 {offsets = [0, 1], sizes = [8, 1], strides = [1, 1]} : vector<8x2xf32> to vector<8x1xf32>
    %248 = arith.mulf %246, %247 : vector<8x1xf32>
    %249 = arith.addf %245, %248 : vector<8x1xf32>
    %cst_81 = arith.constant 2.000000e+00 : f32
    %250 = vector.broadcast %cst_81 : f32 to vector<8x1xf32>
    %251 = arith.mulf %250, %249 : vector<8x1xf32>
    %252 = vector.broadcast %251 : vector<8x1xf32> to vector<8x2xf32>
    %253 = arith.mulf %252, %242 : vector<8x2xf32>
    %254 = arith.subf %224, %253 : vector<8x2xf32>
    %255 = vector.extract_strided_slice %254 {offsets = [0, 0], sizes = [8, 1], strides = [1, 1]} : vector<8x2xf32> to vector<8x1xf32>
    %c6 = arith.constant 6 : index
    %c0_82 = arith.constant 0 : index
    %256 = vector.load %arg2[%c6, %c0_82] : memref<8x128xf32, #tpu.memory_space<vmem>>, vector<1x32xf32>
    %257 = vector.broadcast %255 : vector<8x1xf32> to vector<8x32xf32>
    %258 = vector.broadcast %256 : vector<1x32xf32> to vector<8x32xf32>
    %259 = arith.mulf %257, %258 : vector<8x32xf32>
    %260 = vector.extract_strided_slice %254 {offsets = [0, 1], sizes = [8, 1], strides = [1, 1]} : vector<8x2xf32> to vector<8x1xf32>
    %c7 = arith.constant 7 : index
    %c0_83 = arith.constant 0 : index
    %261 = vector.load %arg2[%c7, %c0_83] : memref<8x128xf32, #tpu.memory_space<vmem>>, vector<1x32xf32>
    %262 = vector.broadcast %260 : vector<8x1xf32> to vector<8x32xf32>
    %263 = vector.broadcast %261 : vector<1x32xf32> to vector<8x32xf32>
    %264 = arith.mulf %262, %263 : vector<8x32xf32>
    %265 = arith.addf %259, %264 : vector<8x32xf32>
    %c3 = arith.constant 3 : index
    %c0_84 = arith.constant 0 : index
    %266 = vector.load %arg2[%c3, %c0_84] : memref<8x128xf32, #tpu.memory_space<vmem>>, vector<1x32xf32>
    %267 = vector.broadcast %266 : vector<1x32xf32> to vector<8x32xf32>
    %268 = arith.addf %265, %267 : vector<8x32xf32>
    %cst_85 = arith.constant 0.000000e+00 : f32
    %269 = vector.broadcast %cst_85 : f32 to vector<8x32xf32>
    %270 = arith.maximumf %268, %269 : vector<8x32xf32>
    %271 = arith.truncf %270 : vector<8x32xf32> to vector<8x32xbf16>
    %c112 = arith.constant 112 : index
    %c0_86 = arith.constant 0 : index
    %272 = vector.load %arg1[%c112, %c0_86] : memref<208x128xbf16, #tpu.memory_space<vmem>>, vector<32x64xbf16>
    %cst_87 = arith.constant dense<0.000000e+00> : vector<8x64xf32>
    %273 = tpu.matmul %271, %272, %cst_87 {dimension_numbers = #tpu.dot_dimension_numbers<[1], [0], [0], [1], [0, 0, 1, 1], [], []>} : vector<8x32xbf16>, vector<32x64xbf16>, vector<8x64xf32> -> vector<8x64xf32>
    %c4 = arith.constant 4 : index
    %c0_88 = arith.constant 0 : index
    %274 = vector.load %arg2[%c4, %c0_88] : memref<8x128xf32, #tpu.memory_space<vmem>>, vector<1x64xf32>
    %275 = vector.broadcast %274 : vector<1x64xf32> to vector<8x64xf32>
    %276 = arith.addf %273, %275 : vector<8x64xf32>
    %cst_89 = arith.constant 0.000000e+00 : f32
    %277 = vector.broadcast %cst_89 : f32 to vector<8x64xf32>
    %278 = arith.maximumf %276, %277 : vector<8x64xf32>
    %279 = arith.truncf %278 : vector<8x64xf32> to vector<8x64xbf16>
    %c144 = arith.constant 144 : index
    %c0_90 = arith.constant 0 : index
    %280 = vector.load %arg1[%c144, %c0_90] : memref<208x128xbf16, #tpu.memory_space<vmem>>, vector<64x128xbf16>
    %cst_91 = arith.constant dense<0.000000e+00> : vector<8x128xf32>
    %281 = tpu.matmul %279, %280, %cst_91 {dimension_numbers = #tpu.dot_dimension_numbers<[1], [0], [0], [1], [0, 0, 1, 1], [], []>} : vector<8x64xbf16>, vector<64x128xbf16>, vector<8x128xf32> -> vector<8x128xf32>
    %c5 = arith.constant 5 : index
    %c0_92 = arith.constant 0 : index
    %282 = vector.load %arg2[%c5, %c0_92] : memref<8x128xf32, #tpu.memory_space<vmem>>, vector<1x128xf32>
    %283 = vector.broadcast %282 : vector<1x128xf32> to vector<8x128xf32>
    %284 = arith.addf %281, %283 : vector<8x128xf32>
    %285 = vector.extract_strided_slice %284 {offsets = [0, 0], sizes = [8, 16], strides = [1, 1]} : vector<8x128xf32> to vector<8x16xf32>
    %286 = tpu.iota {dimensions = array<i32: 0>} : vector<8x1xi32>
    %c4_i32 = arith.constant 4 : i32
    %287 = vector.broadcast %c4_i32 : i32 to vector<8x1xi32>
    %288 = arith.cmpi slt, %286, %287 : vector<8x1xi32>
    %289 = arith.extui %288 : vector<8x1xi1> to vector<8x1xi32>
    %290 = arith.sitofp %289 : vector<8x1xi32> to vector<8x1xf32>
    %291 = arith.mulf %102, %290 : vector<8x1xf32>
    %292 = vector.shape_cast %291 : vector<8x1xf32> to vector<1x8x1xf32>
    %cst_93 = arith.constant dense<0.000000e+00> : vector<1xf32>
    %293 = vector.multi_reduction <add>, %292, %cst_93 [1, 2] : vector<1x8x1xf32> to vector<1xf32>
    %294 = vector.shape_cast %293 : vector<1xf32> to vector<1x1x1xf32>
    %295 = vector.extract %294[0, 0, 0] : f32 from vector<1x1x1xf32>
    %cst_94 = arith.constant 2.500000e-01 : f32
    %296 = arith.mulf %295, %cst_94 : f32
    %297 = arith.subf %285, %0 : vector<8x16xf32>
    %298 = math.absf %297 : vector<8x16xf32>
    %299 = vector.broadcast %290 : vector<8x1xf32> to vector<8x16xf32>
    %300 = arith.mulf %298, %299 : vector<8x16xf32>
    %301 = vector.shape_cast %300 : vector<8x16xf32> to vector<1x8x16xf32>
    %cst_95 = arith.constant dense<0.000000e+00> : vector<1xf32>
    %302 = vector.multi_reduction <add>, %301, %cst_95 [1, 2] : vector<1x8x16xf32> to vector<1xf32>
    %303 = vector.shape_cast %302 : vector<1xf32> to vector<1x1x1xf32>
    %304 = vector.extract %303[0, 0, 0] : f32 from vector<1x1x1xf32>
    %cst_96 = arith.constant 1.562500e-02 : f32
    %305 = arith.mulf %304, %cst_96 : f32
    %306 = arith.addf %296, %305 : f32
    %307 = tpu.iota {dimensions = array<i32: 1>} : vector<8x128xi32>
    %c32_i32 = arith.constant 32 : i32
    %308 = vector.broadcast %c32_i32 : i32 to vector<8x128xi32>
    %309 = arith.cmpi eq, %307, %308 : vector<8x128xi32>
    %310 = vector.extract_strided_slice %254 {offsets = [0, 0], sizes = [8, 1], strides = [1, 1]} : vector<8x2xf32> to vector<8x1xf32>
    %311 = vector.shape_cast %310 : vector<8x1xf32> to vector<8x1xf32>
    %312 = vector.broadcast %311 : vector<8x1xf32> to vector<8x128xf32>
    %313 = arith.select %309, %312, %284 : vector<8x128xi1>, vector<8x128xf32>
    %c33_i32 = arith.constant 33 : i32
    %314 = vector.broadcast %c33_i32 : i32 to vector<8x128xi32>
    %315 = arith.cmpi eq, %307, %314 : vector<8x128xi32>
    %316 = vector.extract_strided_slice %254 {offsets = [0, 1], sizes = [8, 1], strides = [1, 1]} : vector<8x2xf32> to vector<8x1xf32>
    %317 = vector.shape_cast %316 : vector<8x1xf32> to vector<8x1xf32>
    %318 = vector.broadcast %317 : vector<8x1xf32> to vector<8x128xf32>
    %319 = arith.select %315, %318, %313 : vector<8x128xi1>, vector<8x128xf32>
    %c64_i32 = arith.constant 64 : i32
    %320 = vector.broadcast %c64_i32 : i32 to vector<8x128xi32>
    %321 = arith.cmpi eq, %307, %320 : vector<8x128xi32>
    %322 = vector.extract_strided_slice %35 {offsets = [0, 0], sizes = [8, 1], strides = [1, 1]} : vector<8x2xf32> to vector<8x1xf32>
    %323 = vector.shape_cast %322 : vector<8x1xf32> to vector<8x1xf32>
    %324 = vector.broadcast %323 : vector<8x1xf32> to vector<8x128xf32>
    %325 = arith.select %321, %324, %319 : vector<8x128xi1>, vector<8x128xf32>
    %c65_i32 = arith.constant 65 : i32
    %326 = vector.broadcast %c65_i32 : i32 to vector<8x128xi32>
    %327 = arith.cmpi eq, %307, %326 : vector<8x128xi32>
    %328 = vector.extract_strided_slice %35 {offsets = [0, 1], sizes = [8, 1], strides = [1, 1]} : vector<8x2xf32> to vector<8x1xf32>
    %329 = vector.shape_cast %328 : vector<8x1xf32> to vector<8x1xf32>
    %330 = vector.broadcast %329 : vector<8x1xf32> to vector<8x128xf32>
    %331 = arith.select %327, %330, %325 : vector<8x128xi1>, vector<8x128xf32>
    %c96_i32 = arith.constant 96 : i32
    %332 = vector.broadcast %c96_i32 : i32 to vector<8x128xi32>
    %333 = arith.cmpi eq, %307, %332 : vector<8x128xi32>
    %334 = vector.shape_cast %40 : vector<8x1xf32> to vector<8x1xf32>
    %335 = vector.broadcast %334 : vector<8x1xf32> to vector<8x128xf32>
    %336 = arith.select %333, %335, %331 : vector<8x128xi1>, vector<8x128xf32>
    %c97_i32 = arith.constant 97 : i32
    %337 = vector.broadcast %c97_i32 : i32 to vector<8x128xi32>
    %338 = arith.cmpi eq, %307, %337 : vector<8x128xi32>
    %339 = vector.broadcast %306 : f32 to vector<8x128xf32>
    %340 = arith.select %338, %339, %336 : vector<8x128xi1>, vector<8x128xf32>
    %c0_97 = arith.constant 0 : index
    %c0_98 = arith.constant 0 : index
    %341 = vector.load %arg4[%c0_97, %c0_98] : memref<8x128xf32, #tpu.memory_space<vmem>>, vector<8x128xf32>
    tpu.vector_store %arg4[%c0_97, %c0_98], %340 {strides = array<i32>} : memref<8x128xf32, #tpu.memory_space<vmem>>, vector<8x128xf32>,
    return
  }
}

</mosaic_0001>

<llo_original>
// kernel: spherical_vae_forward.1
$region0: #{spherical_vae_forward.1}
  #allocation0 [shape = 'u32[]', space=smem, size = 0x4, offset = 0x4, fixed_abs, tag = 'smem constant byte address 0x4 - core index']
  #allocation1 [shape = 'u32[144,128]{1,0:T(1,128)}', space=vmem, size = 0x12000, scoped, tag = 'internal scratch']
  %s0 = inlined_call_operand.vmem [shape: f32[8,16], index: 0, kind: input, shape index: {}]
  %s1 = inlined_call_operand.hbm [shape: bf16[208,128], index: 1, kind: input, shape index: {}]
  %s2 = inlined_call_operand.vmem [shape: f32[8,128], index: 2, kind: input, shape index: {}]
  %s3 = inlined_call_operand.hbm [shape: f32[8,384], index: 3, kind: input, shape index: {}]
  %s4 = inlined_call_operand.vmem [shape: f32[8,128], index: 4, kind: output, shape index: {}]
  %s5 = sld [smem:[#allocation0]]
  $region34: #{spherical_vae_forward.1} parent=0
    _
  %s7 = ssub.s32 1, %s5
  %s8 = scalar_select 0, %s7, %s5
  $region1: #{spherical_vae_forward.1} parent=0
    #allocation2 [shape = 'u8[53248]{0}', space=vmem, size = 0xd000, scoped, tag = 'input window, operand 1, single buffered']
    #allocation3 [shape = 's32[1]{0}', space=sflag, size = 0x4, scoped, tag = 'scoped memory for spherical_vae_forward.1']
    #allocation4 [shape = 'u8[12288]{0}', space=vmem, size = 0x3000, scoped, tag = 'input window, operand 3, single buffered']
    #allocation5 [shape = 's32[1]{0}', space=sflag, size = 0x4, scoped, tag = 'scoped memory for spherical_vae_forward.1']
    %9 = vsyncpa [#allocation3], 0
    %10 = vsyncpa [#allocation5], 0
    // Predicated region
    $region2: #{spherical_vae_forward.1} parent=1 // pred_check
      _
    $region3: #{spherical_vae_forward.1} parent=1 // pred_check_branch
      %12 = sbr.rel (0) target = $region5
    $region4: #{spherical_vae_forward.1} parent=1 // pred_region
      _
    $region5: #{spherical_vae_forward.1} parent=1 // pred_fallthru
      _
    // Predicated region
    $region6: #{spherical_vae_forward.1} parent=1 // pred_check
      _
    $region7: #{spherical_vae_forward.1} parent=1 // pred_check_branch
      %14 = sbr.rel (0) target = $region9
    $region8: #{spherical_vae_forward.1} parent=1 // pred_region
      %s16 = ssub.s32 1664, 1664
      %17 = vsyncadd [#allocation3], %s16
      %s18 = sshll.u32 [#allocation2], 4
      %s19 = int_to_ptr.vmem [resolvable:$true] %s18
      %24 = dma.hbm_to_vmem [thread:$0]  %s1, 1664, %s19, [#allocation3], 64, 64, 4
    $region9: #{spherical_vae_forward.1} parent=1 // pred_fallthru
      _
    // Predicated region
    $region10: #{spherical_vae_forward.1} parent=1 // pred_check
      _
    $region11: #{spherical_vae_forward.1} parent=1 // pred_check_branch
      %26 = sbr.rel (0) target = $region13
    $region12: #{spherical_vae_forward.1} parent=1 // pred_region
      _
    $region13: #{spherical_vae_forward.1} parent=1 // pred_fallthru
      _
    // Predicated region
    $region14: #{spherical_vae_forward.1} parent=1 // pred_check
      _
    $region15: #{spherical_vae_forward.1} parent=1 // pred_check_branch
      %28 = sbr.rel (0) target = $region17
    $region16: #{spherical_vae_forward.1} parent=1 // pred_region
      %s30 = ssub.s32 384, 384
      %31 = vsyncadd [#allocation5], %s30
      %s33 = sshll.u32 [#allocation4], 4
      %s34 = int_to_ptr.vmem [resolvable:$true] %s33
      %36 = dma.hbm_to_vmem [thread:$0]  %s3, 384, %s34, [#allocation5]
    $region17: #{spherical_vae_forward.1} parent=1 // pred_fallthru
      _
    // Predicated region
    $region18: #{spherical_vae_forward.1} parent=1 // pred_check
      _
    $region19: #{spherical_vae_forward.1} parent=1 // pred_check_branch
      %38 = sbr.rel (0) target = $region21
    $region20: #{spherical_vae_forward.1} parent=1 // pred_region
      %39 = dma.done [#allocation3], 1664
    $region21: #{spherical_vae_forward.1} parent=1 // pred_fallthru
      _
    // Predicated region
    $region22: #{spherical_vae_forward.1} parent=1 // pred_check
      _
    $region23: #{spherical_vae_forward.1} parent=1 // pred_check_branch
      %41 = sbr.rel (0) target = $region25
    $region24: #{spherical_vae_forward.1} parent=1 // pred_region
      %42 = dma.done [#allocation5], 384
    $region25: #{spherical_vae_forward.1} parent=1 // pred_fallthru
      _
    %v44 = vld [vmem:[%s0] sm:$0xff]
    %v45 = vpack.c.bf16 %v44, %v44
    %v46 = vld [vmem:[#allocation2] sm:$0xf]
    %v47 = vld [vmem:[#allocation2 + $0x4] sm:$0xf]
    %v48 = vld [vmem:[%s2] sm:$0x1]
    %v49 = vlaneseq
    %v50 = vshrl.u32 %v49, 7
    %v51 = vsub.s32 0, %v50
    %v52 = vrot.slane %v48, %v51
    %v55 = vunpack.c.l.b16 %v46
    %v56 = vunpack.c.l.b16 %v47
    %v57 = vpack.c.b16 %v56, %v55
    %vm59 = vcmask 130048
    %v61 = vsel %vm59, %v45, 0
    %63 = vmatprep.subr.bf16.mxu0 0
    %64 = vmatpush1.bf16.msra.mxu0 %v57
    %65 = vmatprep.subr.bf16.mxu0 0
    %66 = vmatpush1.bf16.msra.mxu0 0
    %67 = vmatprep.subr.bf16.mxu0 0
    %68 = vmatpush1.bf16.msra.mxu0 0
    %69 = vmatprep.subr.bf16.mxu0 0
    %70 = vmatpush1.bf16.msra.mxu0 0
    %71 = vmatprep.subr.bf16.mxu0 0
    %72 = vmatpush1.bf16.msra.mxu0 0
    %73 = vmatprep.subr.bf16.mxu0 0
    %74 = vmatpush1.bf16.msra.mxu0 0
    %75 = vmatprep.subr.bf16.mxu0 0
    %76 = vmatpush1.bf16.msra.mxu0 0
    %77 = vmatprep.subr.bf16.mxu0 0
    %78 = vmatpush1.bf16.msra.mxu0 0
    %79 = vmatprep.subr.bf16.mxu0 0
    %80 = vmatpush1.bf16.msra.mxu0 0
    %81 = vmatprep.subr.bf16.mxu0 0
    %82 = vmatpush1.bf16.msra.mxu0 0
    %83 = vmatprep.subr.bf16.mxu0 0
    %84 = vmatpush1.bf16.msra.mxu0 0
    %85 = vmatprep.subr.bf16.mxu0 0
    %86 = vmatpush1.bf16.msra.mxu0 0
    %87 = vmatprep.subr.bf16.mxu0 0
    %88 = vmatpush1.bf16.msra.mxu0 0
    %89 = vmatprep.subr.bf16.mxu0 0
    %90 = vmatpush1.bf16.msra.mxu0 0
    %91 = vmatprep.subr.bf16.mxu0 0
    %92 = vmatpush1.bf16.msra.mxu0 0
    %93 = vmatprep.subr.bf16.mxu0 0
    %94 = vmatpush1.bf16.msra.mxu0 0
    %95 = vmatprep.mubr.bf16.mxu0 0
    %96 = vmatmul.mubr.bf16.gmra.mrb[0].mxu0 %v61
    %v97 = vpop.f32.mrb[0].mxu0
    %v98 = vadd.f32 %v52, %v97
    %v99 = vpop.f32.mrb[0].mxu0
    %v100 = vpop.f32.mrb[0].mxu0
    %v101 = vpop.f32.mrb[0].mxu0
    %102 = vdwg.mxu0
    %v103 = vmax.f32 %v98, 0.0
    %v104 = vpack.c.bf16 %v103, %v103
    %v105 = vld [vmem:[#allocation2 + $0x8] sm:$0xf]
    %v106 = vld [vmem:[#allocation2 + $0xc] sm:$0xf]
    %v107 = vld [vmem:[#allocation2 + $0x10] sm:$0xf]
    %v108 = vld [vmem:[#allocation2 + $0x14] sm:$0xf]
    %v109 = vld [vmem:[#allocation2 + $0x18] sm:$0xf]
    %v110 = vld [vmem:[#allocation2 + $0x1c] sm:$0xf]
    %v111 = vld [vmem:[#allocation2 + $0x20] sm:$0xf]
    %v112 = vld [vmem:[#allocation2 + $0x24] sm:$0xf]
    %v113 = vld [vmem:[%s2 + $0x1] sm:$0x1]
    %v114 = vlaneseq
    %v115 = vshrl.u32 %v114, 7
    %v116 = vsub.s32 0, %v115
    %v117 = vrot.slane %v113, %v116
    %v126 = vunpack.c.l.b16 %v105
    %v127 = vunpack.c.l.b16 %v106
    %v128 = vunpack.c.l.b16 %v107
    %v129 = vunpack.c.l.b16 %v108
    %v130 = vunpack.c.l.b16 %v109
    %v131 = vunpack.c.l.b16 %v110
    %v132 = vunpack.c.l.b16 %v111
    %v133 = vunpack.c.l.b16 %v112
    %v134 = vpack.c.b16 %v127, %v126
    %v135 = vpack.c.b16 %v129, %v128
    %v136 = vpack.c.b16 %v131, %v130
    %v137 = vpack.c.b16 %v133, %v132
    %vm142 = vcmask 523264
    %v144 = vsel %vm142, %v104, 0
    %146 = vmatprep.subr.bf16.mxu0 0
    %147 = vmatpush1.bf16.msra.mxu0 %v134
    %148 = vmatprep.subr.bf16.mxu0 0
    %149 = vmatpush1.bf16.msra.mxu0 %v135
    %150 = vmatprep.subr.bf16.mxu0 0
    %151 = vmatpush1.bf16.msra.mxu0 %v136
    %152 = vmatprep.subr.bf16.mxu0 0
    %153 = vmatpush1.bf16.msra.mxu0 %v137
    %154 = vmatprep.subr.bf16.mxu0 0
    %155 = vmatpush1.bf16.msra.mxu0 0
    %156 = vmatprep.subr.bf16.mxu0 0
    %157 = vmatpush1.bf16.msra.mxu0 0
    %158 = vmatprep.subr.bf16.mxu0 0
    %159 = vmatpush1.bf16.msra.mxu0 0
    %160 = vmatprep.subr.bf16.mxu0 0
    %161 = vmatpush1.bf16.msra.mxu0 0
    %162 = vmatprep.subr.bf16.mxu0 0
    %163 = vmatpush1.bf16.msra.mxu0 0
    %164 = vmatprep.subr.bf16.mxu0 0
    %165 = vmatpush1.bf16.msra.mxu0 0
    %166 = vmatprep.subr.bf16.mxu0 0
    %167 = vmatpush1.bf16.msra.mxu0 0
    %168 = vmatprep.subr.bf16.mxu0 0
    %169 = vmatpush1.bf16.msra.mxu0 0
    %170 = vmatprep.subr.bf16.mxu0 0
    %171 = vmatpush1.bf16.msra.mxu0 0
    %172 = vmatprep.subr.bf16.mxu0 0
    %173 = vmatpush1.bf16.msra.mxu0 0
    %174 = vmatprep.subr.bf16.mxu0 0
    %175 = vmatpush1.bf16.msra.mxu0 0
    %176 = vmatprep.subr.bf16.mxu0 0
    %177 = vmatpush1.bf16.msra.mxu0 0
    %178 = vmatprep.mubr.bf16.mxu0 0
    %179 = vmatmul.mubr.bf16.gmra.mrb[0].mxu0 %v144
    %v180 = vpop.f32.mrb[0].mxu0
    %v181 = vadd.f32 %v117, %v180
    %v182 = vpop.f32.mrb[0].mxu0
    %v183 = vpop.f32.mrb[0].mxu0
    %v184 = vpop.f32.mrb[0].mxu0
    %185 = vdwg.mxu0
    %v186 = vmax.f32 %v181, 0.0
    %v187 = vpack.c.bf16 %v186, %v186
    %v188 = vld [vmem:[#allocation2 + $0x28] sm:$0xf]
    %v189 = vld [vmem:[#allocation2 + $0x2c] sm:$0xf]
    %v190 = vld [vmem:[#allocation2 + $0x30] sm:$0xf]
    %v191 = vld [vmem:[#allocation2 + $0x34] sm:$0xf]
    %v192 = vld [vmem:[%s2 + $0x2] sm:$0x1]
    %v193 = vlaneseq
    %v194 = vshrl.u32 %v193, 7
    %v195 = vsub.s32 0, %v194
    %v196 = vrot.slane %v192, %v195
    %v201 = vunpack.c.l.b16 %v188
    %v202 = vunpack.c.l.b16 %v189
    %v203 = vunpack.c.l.b16 %v190
    %v204 = vunpack.c.l.b16 %v191
    %v205 = vpack.c.b16 %v202, %v201
    %v206 = vpack.c.b16 %v204, %v203
    %vm209 = vcmask 261120
    %v211 = vsel %vm209, %v187, 0
    %213 = vmatprep.subr.bf16.mxu0 0
    %214 = vmatpush1.bf16.msra.mxu0 %v205
    %215 = vmatprep.subr.bf16.mxu0 0
    %216 = vmatpush1.bf16.msra.mxu0 %v206
    %217 = vmatprep.subr.bf16.mxu0 0
    %218 = vmatpush1.bf16.msra.mxu0 0
    %219 = vmatprep.subr.bf16.mxu0 0
    %220 = vmatpush1.bf16.msra.mxu0 0
    %221 = vmatprep.subr.bf16.mxu0 0
    %222 = vmatpush1.bf16.msra.mxu0 0
    %223 = vmatprep.subr.bf16.mxu0 0
    %224 = vmatpush1.bf16.msra.mxu0 0
    %225 = vmatprep.subr.bf16.mxu0 0
    %226 = vmatpush1.bf16.msra.mxu0 0
    %227 = vmatprep.subr.bf16.mxu0 0
    %228 = vmatpush1.bf16.msra.mxu0 0
    %229 = vmatprep.subr.bf16.mxu0 0
    %230 = vmatpush1.bf16.msra.mxu0 0
    %231 = vmatprep.subr.bf16.mxu0 0
    %232 = vmatpush1.bf16.msra.mxu0 0
    %233 = vmatprep.subr.bf16.mxu0 0
    %234 = vmatpush1.bf16.msra.mxu0 0
    %235 = vmatprep.subr.bf16.mxu0 0
    %236 = vmatpush1.bf16.msra.mxu0 0
    %237 = vmatprep.subr.bf16.mxu0 0
    %238 = vmatpush1.bf16.msra.mxu0 0
    %239 = vmatprep.subr.bf16.mxu0 0
    %240 = vmatpush1.bf16.msra.mxu0 0
    %241 = vmatprep.subr.bf16.mxu0 0
    %242 = vmatpush1.bf16.msra.mxu0 0
    %243 = vmatprep.subr.bf16.mxu0 0
    %244 = vmatpush1.bf16.msra.mxu0 0
    %245 = vmatprep.mubr.bf16.mxu0 0
    %246 = vmatmul.mubr.bf16.gmra.mrb[0].mxu0 %v211
    %v247 = vpop.f32.mrb[0].mxu0
    %v248 = vadd.f32 %v196, %v247
    %v249 = vpop.f32.mrb[0].mxu0
    %v250 = vpop.f32.mrb[0].mxu0
    %v251 = vpop.f32.mrb[0].mxu0
    %252 = vdwg.mxu0
    %v253 = vmul.f32 %v248, %v248
    %255 = vrot.lane.b32.xlu0 %v253, 127
    %v256 = vpop.permute.xlu0 %255
    %v258 = vadd.f32 %v253, %v256
    %v259 = vadd.f32 %v258, 1e-12
    %v260 = vrsqrt.pop %v259
    %262 = vset.pattern.permute.xlu0 0
    %263 = vperm.xlu0 %262, %v260
    %v264 = vpop.permute.xlu0 %263
    %v266 = vmul.f32 %v248, %v264
    %v267 = vmax.f32 %v248, 0.0
    %v268 = vadd.f32 %v267, 10.0
    %v269 = vrcp.pop %v268
    %v270 = vmul.f32 3.75, %v269
    %v271 = vmul.f32 %v270, 0.00392377
    %v272 = vadd.f32 %v271, -0.01647633
    %v273 = vmul.f32 %v272, %v270
    %v274 = vadd.f32 %v273, 0.02635537
    %v275 = vmul.f32 %v274, %v270
    %v276 = vadd.f32 %v275, -0.02057706
    %v277 = vmul.f32 %v276, %v270
    %v278 = vadd.f32 %v277, 0.00916281
    %v279 = vmul.f32 %v278, %v270
    %v280 = vadd.f32 %v279, -0.00157565
    %v281 = vmul.f32 %v280, %v270
    %v282 = vadd.f32 %v281, 0.00225319
    %v283 = vmul.f32 %v282, %v270
    %v284 = vadd.f32 %v283, 0.01328592
    %v285 = vmul.f32 %v284, %v270
    %v286 = vadd.f32 %v285, 0.3989423
    %v287 = vmul.f32 %v270, -0.00420059
    %v288 = vadd.f32 %v287, 0.01787654
    %v289 = vmul.f32 %v288, %v270
    %v290 = vadd.f32 %v289, -0.02895312
    %v291 = vmul.f32 %v290, %v270
    %v292 = vadd.f32 %v291, 0.02282967
    %v293 = vmul.f32 %v292, %v270
    %v294 = vadd.f32 %v293, -0.01031555
    %v295 = vmul.f32 %v294, %v270
    %v296 = vadd.f32 %v295, 0.00163801
    %v297 = vmul.f32 %v296, %v270
    %v298 = vadd.f32 %v297, -0.00362018
    %v299 = vmul.f32 %v298, %v270
    %v300 = vadd.f32 %v299, -0.03988024
    %v301 = vmul.f32 %v300, %v270
    %v302 = vadd.f32 %v301, 0.3989423
    %v303 = vrcp.pop %v286
    %v304 = vmul.f32 %v302, %v303
    %v305 = vsub.f32 %v304, 1.0
    %v306 = vmul.f32 %v268, %v305
    %v307 = vlog2.pop %v286
    %v308 = vmul.f32 %v307, 0.6931472
    %v309 = vsub.f32 %v306, %v308
    %v310 = vlog2.pop %v268
    %v311 = vmul.f32 %v310, 0.6931472
    %v312 = vmul.f32 %v311, 0.5
    %v313 = vadd.f32 %v309, %v312
    %v314 = vld [vmem:[#allocation4] sm:$0xff]
    %v315 = vld [vmem:[#allocation4 + $0x8] sm:$0xff]
    %v316 = vld [vmem:[#allocation4 + $0x10] sm:$0xff]
    %v317 = vmax.f32 %v315, 1e-07
    %v318 = vmin.f32 %v317, 0.9999999
    %vm319 = vcmp.lt.f32.partialorder %v316, 0.5
    %v320 = vsel %vm319, -1.0, 1.0
    %v321 = vmul.f32 %v268, 4.0
    %v322 = vmul.f32 %v321, %v268
    %v323 = vadd.f32 %v322, 1.0
    %v324 = vrsqrt.pop %v323
    %v325 = vmul.f32 %v323, %v324
    %vm326 = vcmp.eq.f32.partialorder %v323, inf
    %v327 = vsel %vm326, %v323, %v325
    %vm328 = vcmp.eq.f32.partialorder %v323, 0.0
    %v329 = vand.u32 %v323, 2147483648
    %v330 = vsel %vm328, %v329, %v327
    %v331 = vmul.f32 %v268, 2.0
    %v332 = vsub.f32 %v330, %v331
    %v333 = vrcp.pop %v321
    %v334 = vmul.f32 1.0, %v333
    %v335 = vsub.f32 %v268, 10.0
    %v336 = vmax.f32 %v335, 0.0
    %v337 = vmin.f32 %v336, 1.0
    %v338 = vmul.f32 %v334, %v337
    %v339 = vsub.f32 1.0, %v337
    %v340 = vmul.f32 %v332, %v339
    %v341 = vadd.f32 %v338, %v340
    %v342 = vadd.f32 %v331, 1.0
    %v343 = vadd.f32 %v342, %v330
    %v344 = vmul.f32 %v343, 0.25
    %v345 = vmul.f32 %v344, 4.0
    %v346 = vmul.f32 %v345, %v341
    %v347 = vadd.f32 %v341, 1.0
    %v348 = vrcp.pop %v347
    %v349 = vmul.f32 %v346, %v348
    %v350 = vmul.f32 %v314, 1.5707964
    %v351 = vmul.f32 %v350, %v350
    %v352 = vmul.f32 %v351, 2.7557319e-06
    %v353 = vadd.f32 %v352, -0.0001984127
    %v354 = vmul.f32 %v351, %v353
    %v355 = vadd.f32 %v354, 0.008333334
    %v356 = vmul.f32 %v351, %v355
    %v357 = vadd.f32 %v356, -0.16666667
    %v358 = vmul.f32 %v351, %v357
    %v359 = vadd.f32 %v358, 1.0
    %v360 = vmul.f32 %v350, %v359
    %v361 = vmul.f32 %v360, %v360
    %v362 = vsub.f32 1.0, %v341
    %364 = vset.pattern.permute.xlu0 2
    %365 = vperm.xlu0 %364, %v362
    %v366 = vpop.permute.xlu0 %365
    %v368 = vmul.f32 %v366, %v361
    %v369 = vsub.f32 1.0, %v368
    %371 = vset.pattern.permute.xlu0 2
    %372 = vperm.xlu0 %371, %v347
    %v373 = vpop.permute.xlu0 %372
    %v375 = vmul.f32 %v373, %v361
    %v376 = vsub.f32 1.0, %v375
    %v377 = vrcp.pop %v369
    %v378 = vmul.f32 %v376, %v377
    %v379 = vmul.f32 %v344, 2.0
    %v380 = vmul.f32 %v379, %v341
    %382 = vset.pattern.permute.xlu0 2
    %383 = vperm.xlu0 %382, %v380
    %v384 = vpop.permute.xlu0 %383
    %v386 = vmul.f32 %v384, %v377
    %388 = vset.pattern.permute.xlu0 2
    %389 = vperm.xlu0 %388, %v349
    %v390 = vpop.permute.xlu0 %389
    %v392 = vsub.f32 %v390, %v386
    %v393 = vmul.f32 %v392, 1.442695
    %v394 = vpow.pop %v393
    %v395 = vmul.f32 %v386, %v394
    %vm396 = vcmp.gt.f32.partialorder %v395, %v318
    %v397 = vlaneseq
    %v398 = vand.u32 %v397, 127
    %v399 = vcvt.s32.f32 %v398
    %v400 = vsel %vm396, %v399, 128.0
    %401 = vmin.xlane.f32.xlu0 %v400
    %v402 = vpop.xlane.xlu0 %401
    %v403 = vmin.f32 %v402, 127.0
    %vm404 = vcmp.eq.f32.partialorder %v399, %v403
    %v405 = vsel %vm404, %v378, 0.0
    %406 = vadd.xlane.f32.xlu0 %v405
    %v407 = vpop.xlane.xlu0 %406
    %v408 = vmul.f32 %v407, %v407
    %v409 = vsub.f32 1.0, %v408
    %v410 = vmax.f32 %v409, 1e-10
    %v411 = vmin.f32 %v410, 1.0
    %v412 = vrsqrt.pop %v411
    %v413 = vmul.f32 %v411, %v412
    %vm414 = vcmp.eq.f32.partialorder %v411, inf
    %v415 = vsel %vm414, %v411, %v413
    %vm416 = vcmp.eq.f32.partialorder %v411, 0.0
    %v417 = vand.u32 %v411, 2147483648
    %v418 = vsel %vm416, %v417, %v415
    %vm419 = vcmp.eq.s32.totalorder %v398, 0
    %v420 = vmul.f32 %v320, %v418
    %422 = vset.pattern.permute.xlu0 0
    %423 = vperm.xlu0 %422, %v420
    %v424 = vpop.permute.xlu0 %423
    %v426 = vsel %vm419, %v407, %v424
    %v427 = vsel %vm419, 1.0, 0.0
    %v428 = vsub.f32 %v427, %v266
    %v429 = vmul.f32 %v428, %v428
    %431 = vrot.lane.b32.xlu0 %v429, 127
    %v432 = vpop.permute.xlu0 %431
    %v434 = vadd.f32 %v429, %v432
    %v435 = vadd.f32 %v434, 1e-12
    %v436 = vrsqrt.pop %v435
    %438 = vset.pattern.permute.xlu0 0
    %439 = vperm.xlu0 %438, %v436
    %v440 = vpop.permute.xlu0 %439
    %v442 = vmul.f32 %v428, %v440
    %v443 = vmul.f32 %v426, %v442
    %445 = vrot.lane.b32.xlu0 %v443, 127
    %v446 = vpop.permute.xlu0 %445
    %v448 = vadd.f32 %v443, %v446
    %v449 = vmul.f32 %v448, 2.0
    %451 = vset.pattern.permute.xlu0 0
    %452 = vperm.xlu0 %451, %v449
    %v453 = vpop.permute.xlu0 %452
    %v455 = vmul.f32 %v453, %v442
    %v456 = vsub.f32 %v426, %v455
    %v457 = vld [vmem:[%s2 + $0x6] sm:$0x1]
    %459 = vset.pattern.permute.xlu0 0
    %460 = vperm.xlu0 %459, %v456
    %v461 = vpop.permute.xlu0 %460
    %v463 = vlaneseq
    %v464 = vshrl.u32 %v463, 7
    %v465 = vsub.s32 0, %v464
    %v466 = vrot.slane %v457, %v465
    %v467 = vmul.f32 %v461, %v466
    %v468 = vld [vmem:[%s2 + $0x7] sm:$0x1]
    %469 = vset.pattern.permute.xlu0 1
    %470 = vperm.xlu0 %469, %v456
    %v471 = vpop.permute.xlu0 %470
    %v473 = vlaneseq
    %v474 = vshrl.u32 %v473, 7
    %v475 = vsub.s32 0, %v474
    %v476 = vrot.slane %v468, %v475
    %v477 = vmul.f32 %v471, %v476
    %v478 = vadd.f32 %v467, %v477
    %v479 = vld [vmem:[%s2 + $0x3] sm:$0x1]
    %v480 = vlaneseq
    %v481 = vshrl.u32 %v480, 7
    %v482 = vsub.s32 0, %v481
    %v483 = vrot.slane %v479, %v482
    %v484 = vadd.f32 %v478, %v483
    %v485 = vmax.f32 %v484, 0.0
    %v486 = vpack.c.bf16 %v485, %v485
    %v487 = vld [vmem:[#allocation2 + $0x38] sm:$0xf]
    %v488 = vld [vmem:[#allocation2 + $0x3c] sm:$0xf]
    %v489 = vld [vmem:[#allocation2 + $0x40] sm:$0xf]
    %v490 = vld [vmem:[#allocation2 + $0x44] sm:$0xf]
    %v491 = vld [vmem:[%s2 + $0x4] sm:$0x1]
    %v492 = vlaneseq
    %v493 = vshrl.u32 %v492, 7
    %v494 = vsub.s32 0, %v493
    %v495 = vrot.slane %v491, %v494
    %v500 = vunpack.c.l.b16 %v487
    %v501 = vunpack.c.l.b16 %v488
    %v502 = vunpack.c.l.b16 %v489
    %v503 = vunpack.c.l.b16 %v490
    %v504 = vpack.c.b16 %v501, %v500
    %v505 = vpack.c.b16 %v503, %v502
    %v509 = vsel %vm209, %v486, 0
    %511 = vmatprep.subr.bf16.mxu0 0
    %512 = vmatpush1.bf16.msra.mxu0 %v504
    %513 = vmatprep.subr.bf16.mxu0 0
    %514 = vmatpush1.bf16.msra.mxu0 %v505
    %515 = vmatprep.subr.bf16.mxu0 0
    %516 = vmatpush1.bf16.msra.mxu0 0
    %517 = vmatprep.subr.bf16.mxu0 0
    %518 = vmatpush1.bf16.msra.mxu0 0
    %519 = vmatprep.subr.bf16.mxu0 0
    %520 = vmatpush1.bf16.msra.mxu0 0
    %521 = vmatprep.subr.bf16.mxu0 0
    %522 = vmatpush1.bf16.msra.mxu0 0
    %523 = vmatprep.subr.bf16.mxu0 0
    %524 = vmatpush1.bf16.msra.mxu0 0
    %525 = vmatprep.subr.bf16.mxu0 0
    %526 = vmatpush1.bf16.msra.mxu0 0
    %527 = vmatprep.subr.bf16.mxu0 0
    %528 = vmatpush1.bf16.msra.mxu0 0
    %529 = vmatprep.subr.bf16.mxu0 0
    %530 = vmatpush1.bf16.msra.mxu0 0
    %531 = vmatprep.subr.bf16.mxu0 0
    %532 = vmatpush1.bf16.msra.mxu0 0
    %533 = vmatprep.subr.bf16.mxu0 0
    %534 = vmatpush1.bf16.msra.mxu0 0
    %535 = vmatprep.subr.bf16.mxu0 0
    %536 = vmatpush1.bf16.msra.mxu0 0
    %537 = vmatprep.subr.bf16.mxu0 0
    %538 = vmatpush1.bf16.msra.mxu0 0
    %539 = vmatprep.subr.bf16.mxu0 0
    %540 = vmatpush1.bf16.msra.mxu0 0
    %541 = vmatprep.subr.bf16.mxu0 0
    %542 = vmatpush1.bf16.msra.mxu0 0
    %543 = vmatprep.mubr.bf16.mxu0 0
    %544 = vmatmul.mubr.bf16.gmra.mrb[0].mxu0 %v509
    %v545 = vpop.f32.mrb[0].mxu0
    %v546 = vadd.f32 %v495, %v545
    %v547 = vpop.f32.mrb[0].mxu0
    %v548 = vpop.f32.mrb[0].mxu0
    %v549 = vpop.f32.mrb[0].mxu0
    %550 = vdwg.mxu0
    %v551 = vmax.f32 %v546, 0.0
    %v552 = vpack.c.bf16 %v551, %v551
    %v553 = vld [vmem:[#allocation2 + $0x48] sm:$0xf]
    %v554 = vld [vmem:[#allocation2 + $0x4c] sm:$0xf]
    %v555 = vld [vmem:[#allocation2 + $0x50] sm:$0xf]
    %v556 = vld [vmem:[#allocation2 + $0x54] sm:$0xf]
    %v557 = vld [vmem:[#allocation2 + $0x58] sm:$0xf]
    %v558 = vld [vmem:[#allocation2 + $0x5c] sm:$0xf]
    %v559 = vld [vmem:[#allocation2 + $0x60] sm:$0xf]
    %v560 = vld [vmem:[#allocation2 + $0x64] sm:$0xf]
    %v561 = vld [vmem:[%s2 + $0x5] sm:$0x1]
    %v562 = vlaneseq
    %v563 = vshrl.u32 %v562, 7
    %v564 = vsub.s32 0, %v563
    %v565 = vrot.slane %v561, %v564
    %v574 = vunpack.c.l.b16 %v553
    %v575 = vunpack.c.l.b16 %v554
    %v576 = vunpack.c.l.b16 %v555
    %v577 = vunpack.c.l.b16 %v556
    %v578 = vunpack.c.l.b16 %v557
    %v579 = vunpack.c.l.b16 %v558
    %v580 = vunpack.c.l.b16 %v559
    %v581 = vunpack.c.l.b16 %v560
    %v582 = vpack.c.b16 %v575, %v574
    %v583 = vpack.c.b16 %v577, %v576
    %v584 = vpack.c.b16 %v579, %v578
    %v585 = vpack.c.b16 %v581, %v580
    %v591 = vsel %vm142, %v552, 0
    %593 = vmatprep.subr.bf16.mxu0 0
    %594 = vmatpush1.bf16.msra.mxu0 %v582
    %595 = vmatprep.subr.bf16.mxu0 0
    %596 = vmatpush1.bf16.msra.mxu0 %v583
    %597 = vmatprep.subr.bf16.mxu0 0
    %598 = vmatpush1.bf16.msra.mxu0 %v584
    %599 = vmatprep.subr.bf16.mxu0 0
    %600 = vmatpush1.bf16.msra.mxu0 %v585
    %601 = vmatprep.subr.bf16.mxu0 0
    %602 = vmatpush1.bf16.msra.mxu0 0
    %603 = vmatprep.subr.bf16.mxu0 0
    %604 = vmatpush1.bf16.msra.mxu0 0
    %605 = vmatprep.subr.bf16.mxu0 0
    %606 = vmatpush1.bf16.msra.mxu0 0
    %607 = vmatprep.subr.bf16.mxu0 0
    %608 = vmatpush1.bf16.msra.mxu0 0
    %609 = vmatprep.subr.bf16.mxu0 0
    %610 = vmatpush1.bf16.msra.mxu0 0
    %611 = vmatprep.subr.bf16.mxu0 0
    %612 = vmatpush1.bf16.msra.mxu0 0
    %613 = vmatprep.subr.bf16.mxu0 0
    %614 = vmatpush1.bf16.msra.mxu0 0
    %615 = vmatprep.subr.bf16.mxu0 0
    %616 = vmatpush1.bf16.msra.mxu0 0
    %617 = vmatprep.subr.bf16.mxu0 0
    %618 = vmatpush1.bf16.msra.mxu0 0
    %619 = vmatprep.subr.bf16.mxu0 0
    %620 = vmatpush1.bf16.msra.mxu0 0
    %621 = vmatprep.subr.bf16.mxu0 0
    %622 = vmatpush1.bf16.msra.mxu0 0
    %623 = vmatprep.subr.bf16.mxu0 0
    %624 = vmatpush1.bf16.msra.mxu0 0
    %625 = vmatprep.mubr.bf16.mxu0 0
    %626 = vmatmul.mubr.bf16.gmra.mrb[0].mxu0 %v591
    %v627 = vpop.f32.mrb[0].mxu0
    %v628 = vadd.f32 %v565, %v627
    %v629 = vpop.f32.mrb[0].mxu0
    %v630 = vpop.f32.mrb[0].mxu0
    %v631 = vpop.f32.mrb[0].mxu0
    %632 = vdwg.mxu0
    %v633 = vlaneseq
    %v634 = vshrl.u32 %v633, 7
    %vm635 = vcmp.lt.s32.totalorder %v634, 4
    %v636 = vsel %vm635, 1, 0
    %v637 = vcvt.s32.f32 %v636
    %v638 = vmul.f32 %v313, %v637
    %640 = vrot.lane.b32.xlu0 %v638, 126
    %v641 = vpop.permute.xlu0 %640
    %vm643 = vcmask 7168
    %v644 = vsel %vm643, %v641, 0.0
    %645 = vadd.xlane.f32.xlu0 %v644
    %v646 = vpop.xlane.xlu0 %645
    %v647 = vrot.slane %v646, 4
    %v648 = vadd.f32 %v646, %v647
    %v649 = vrot.slane %v648, 2
    %v650 = vadd.f32 %v648, %v649
    %v651 = vrot.slane %v650, 1
    %v652 = vadd.f32 %v650, %v651
    %s653 = vtos %v652
    %s654 = smul.f32 %s653, 0.25
    %v655 = vsub.f32 %v628, %v44
    %v656 = vand.u32 2147483647, %v655
    %v657 = vmul.f32 %v656, %v637
    %v658 = vsel %vm59, %v657, 0.0
    %659 = vadd.xlane.f32.xlu0 %v658
    %v660 = vpop.xlane.xlu0 %659
    %v661 = vrot.slane %v660, 4
    %v662 = vadd.f32 %v660, %v661
    %v663 = vrot.slane %v662, 2
    %v664 = vadd.f32 %v662, %v663
    %v665 = vrot.slane %v664, 1
    %v666 = vadd.f32 %v664, %v665
    %s667 = vtos %v666
    %s668 = smul.f32 %s667, 0.015625
    %s669 = sadd.f32 %s654, %s668
    %vm670 = vcmp.eq.s32.totalorder %v398, 32
    %v671 = vsel %vm670, %v461, %v628
    %vm672 = vcmp.eq.s32.totalorder %v398, 33
    %v673 = vsel %vm672, %v471, %v671
    %vm674 = vcmp.eq.s32.totalorder %v398, 64
    %676 = vset.pattern.permute.xlu0 0
    %677 = vperm.xlu0 %676, %v266
    %v678 = vpop.permute.xlu0 %677
    %v680 = vsel %vm674, %v678, %v673
    %vm681 = vcmp.eq.s32.totalorder %v398, 65
    %682 = vset.pattern.permute.xlu0 1
    %683 = vperm.xlu0 %682, %v266
    %v684 = vpop.permute.xlu0 %683
    %v686 = vsel %vm681, %v684, %v680
    %vm687 = vcmp.eq.s32.totalorder %v398, 96
    %689 = vset.pattern.permute.xlu0 2
    %690 = vperm.xlu0 %689, %v268
    %v691 = vpop.permute.xlu0 %690
    %v693 = vsel %vm687, %v691, %v686
    %vm694 = vcmp.eq.s32.totalorder %v398, 97
    %v695 = vstv %s669
    %v696 = vsel %vm694, %v695, %v693
    %697 = vst [vmem:[%s4] sm:$0xff] %v696
    // Predicated region
    $region26: #{spherical_vae_forward.1} parent=1 // pred_check
      _
    $region27: #{spherical_vae_forward.1} parent=1 // pred_check_branch
      %699 = sbr.rel (0) target = $region29
    $region28: #{spherical_vae_forward.1} parent=1 // pred_region
      _
    $region29: #{spherical_vae_forward.1} parent=1 // pred_fallthru
      _
    // Predicated region
    $region30: #{spherical_vae_forward.1} parent=1 // pred_check
      _
    $region31: #{spherical_vae_forward.1} parent=1 // pred_check_branch
      %701 = sbr.rel (0) target = $region33
    $region32: #{spherical_vae_forward.1} parent=1 // pred_region
      _
    $region33: #{spherical_vae_forward.1} parent=1 // pred_fallthru
      _
    %702 = vsyncpa [#allocation3], 1
    %703 = vsyncpa [#allocation5], 1

</llo_original>
